<compile_context>
chip_gen: v5e
topology: v5e:2x2
jax: 0.10.0
libtpu: 0.0.40
codegen_flags: <defaults>
</compile_context>

<pallas_src>
import jax
import jax.numpy as jnp
from jax.experimental import pallas as pl
from jax.experimental.pallas import tpu as pltpu

_SUBLANE = 8       # f32 sublane quantum: batch-tile granularity in batch-major layout
_TB_MAX = 2048     # v5e-safe batch tile (see header note 6); override via batch_tile


def _round_up(n, m):
    return -(-n // m) * m


# ----------------------------------------------------------------------------
# Kernels (batch-major: every tile is (TB, features); weights are pre-transposed
# in the wrapper so every contraction is a plain A @ B on the MXU).
# ----------------------------------------------------------------------------
def _mlp_kernel(x_ref, w1_ref, b1_ref, w2_ref, b2_ref, h_ref):
    # x_ref: (TB, S); w1_ref: (S, H); w2_ref: (H, H); b*_ref: (1, H); h_ref: (TB, H)
    h = jnp.dot(x_ref[...], w1_ref[...], preferred_element_type=jnp.float32)
    h = jnp.maximum(h + b1_ref[...], 0.0)
    h = jnp.dot(h.astype(w2_ref.dtype), w2_ref[...],
                preferred_element_type=jnp.float32)
    h = jnp.maximum(h + b2_ref[...], 0.0)
    h_ref[...] = h.astype(h_ref.dtype)


def _heads_kernel(x_ref, w1_ref, b1_ref, w2_ref, b2_ref, wh_ref, bh_ref, head_ref):
    # Trunk (same as _mlp_kernel) + combined actor|critic head wh_ref: (H, HP).
    # The hidden activations are NOT written back to HBM (review item 1).
    h = jnp.dot(x_ref[...], w1_ref[...], preferred_element_type=jnp.float32)
    h = jnp.maximum(h + b1_ref[...], 0.0)
    h = jnp.dot(h.astype(w2_ref.dtype), w2_ref[...],
                preferred_element_type=jnp.float32)
    h = jnp.maximum(h + b2_ref[...], 0.0)
    head = jnp.dot(h.astype(wh_ref.dtype), wh_ref[...],
                   preferred_element_type=jnp.float32) + bh_ref[...]
    head_ref[...] = head.astype(head_ref.dtype)


# ----------------------------------------------------------------------------
# Tiling policy (review items 3, 4, 6)
# ----------------------------------------------------------------------------
def _tiling(B, batch_tile):
    if batch_tile is not None:
        tb = max(_SUBLANE, min(_round_up(batch_tile, _SUBLANE), _TB_MAX))
    else:
        bq = _round_up(B, _SUBLANE)
        nt = pl.cdiv(bq, _TB_MAX)            # fewest tiles under the VMEM-safe cap
        if nt < 2 and bq >= 2 * _SUBLANE:    # v7x megacore: >= 2 programs when possible
            nt = 2
        tb = min(_round_up(pl.cdiv(B, nt), _SUBLANE), _TB_MAX)   # balanced tiles
    tb = min(tb, B)                          # tiny batches: single full-array block
    return tb, pl.cdiv(B, tb)


# ----------------------------------------------------------------------------
# Wrappers
# ----------------------------------------------------------------------------
def actor_critic_forward(x, w1, b1, w2, b2, *, batch_tile=None, out_dtype=None):
    """ActorCritic.forward: relu(fc2(relu(fc1(x)))).

    x  : (B, S) activations (batch-major, used as-is -- no pad/transpose pass).
    w1 : (H, S), b1: (H,)   -- PyTorch nn.Linear (out, in) layout.
    w2 : (H, H), b2: (H,)
    returns (B, H).
    """
    B, S = x.shape
    H = w1.shape[0]
    out_dtype = x.dtype if out_dtype is None else out_dtype
    tb, nt = _tiling(B, batch_tile)

    w1t = w1.T                    # (S, H)  one-time tiny weight transposes only
    w2t = w2.T                    # (H, H)
    b1r = b1.reshape(1, H)
    b2r = b2.reshape(1, H)

    tiled = lambda i: (i, 0)
    const = lambda i: (0, 0)

    return pl.pallas_call(
        _mlp_kernel,
        out_shape=jax.ShapeDtypeStruct((B, H), out_dtype),
        grid=(nt,),
        in_specs=[
            pl.BlockSpec((tb, S), tiled),   # x: batch-tiled; feature dim = full dim
            pl.BlockSpec((S, H), const),    # w1^T (resident in VMEM)
            pl.BlockSpec((1, H), const),    # b1
            pl.BlockSpec((H, H), const),    # w2^T (resident)
            pl.BlockSpec((1, H), const),    # b2
        ],
        out_specs=pl.BlockSpec((tb, H), tiled),
        compiler_params=pltpu.CompilerParams(
            dimension_semantics=("parallel",)),
    )(x, w1t, b1r, w2t, b2r)


def actor_critic_heads(x, w1, b1, w2, b2, wa, ba, wc, bc, *,
                       batch_tile=None, out_dtype=None):
    """Fused trunk + actor + critic heads (the act()/evaluate() compute).

    Returns (logits (B, A), values (B,)).  The hidden activations stay on-chip.
    # TODO(synk): Categorical sampling / log_prob / entropy (torch.distributions)
    # are left to plain JAX outside the kernel -- no Pallas equivalent needed.
    """
    B, S = x.shape
    H = w1.shape[0]
    A = wa.shape[0]
    out_dtype = x.dtype if out_dtype is None else out_dtype
    tb, nt = _tiling(B, batch_tile)

    w1t = w1.T
    w2t = w2.T
    b1r = b1.reshape(1, H)
    b2r = b2.reshape(1, H)

    # Combined (actor | critic) head, zero-padded to a multiple of 8 output
    # columns so the head tile is one aligned (TB, HP) block (review item 5).
    hp = _round_up(A + 1, _SUBLANE)
    wh = jnp.zeros((hp, H), w1.dtype).at[:A].set(wa).at[A].set(wc[0])
    bh = jnp.zeros((hp,), b1.dtype).at[:A].set(ba).at[A].set(bc[0])
    wht = wh.T                    # (H, HP)
    bhr = bh.reshape(1, hp)

    tiled = lambda i: (i, 0)
    const = lambda i: (0, 0)

    head = pl.pallas_call(
        _heads_kernel,
        out_shape=jax.ShapeDtypeStruct((B, hp), out_dtype),
        grid=(nt,),
        in_specs=[
            pl.BlockSpec((tb, S), tiled),
            pl.BlockSpec((S, H), const),
            pl.BlockSpec((1, H), const),
            pl.BlockSpec((H, H), const),
            pl.BlockSpec((1, H), const),
            pl.BlockSpec((H, hp), const),
            pl.BlockSpec((1, hp), const),
        ],
        out_specs=pl.BlockSpec((tb, hp), tiled),
        compiler_params=pltpu.CompilerParams(
            dimension_semantics=("parallel",)),
    )(x, w1t, b1r, w2t, b2r, wht, bhr)

    logits = head[:, :A]
    values = head[:, A]
    return logits, values


# ----------------------------------------------------------------------------
# Params (PyTorch nn.Linear layout + init)
# ----------------------------------------------------------------------------
def init_params(key, state_dim, action_dim, hidden=32):
    ks = jax.random.split(key, 8)

    def lin(kw, kb, fan_out, fan_in):
        lim = 1.0 / jnp.sqrt(fan_in)
        w = jax.random.uniform(kw, (fan_out, fan_in), jnp.float32, -lim, lim)
        b = jax.random.uniform(kb, (fan_out,), jnp.float32, -lim, lim)
        return w, b

    w1, b1 = lin(ks[0], ks[1], hidden, state_dim)
    w2, b2 = lin(ks[2], ks[3], hidden, hidden)
    wa, ba = lin(ks[4], ks[5], action_dim, hidden)
    wc, bc = lin(ks[6], ks[7], 1, hidden)
    return w1, b1, w2, b2, wa, ba, wc, bc


if __name__ == "__main__":
    key = jax.random.PRNGKey(0)
    kx1, kx2, kp = jax.random.split(key, 3)

    state_dim, action_dim, hidden = 4, 4, 32
    w1, b1, w2, b2, wa, ba, wc, bc = init_params(kp, state_dim, action_dim, hidden)

    def ref_forward(x):
        h = jnp.maximum(x @ w1.T + b1, 0.0)
        return jnp.maximum(h @ w2.T + b2, 0.0)

    # 1) Small batch: auto-tiling splits into 2 programs (v7x megacore rule).
    x_small = jax.random.normal(kx1, (64, state_dim), jnp.float32)
    out_small = jax.block_until_ready(
        actor_critic_forward(x_small, w1, b1, w2, b2))
    assert out_small.shape == (64, hidden)
    assert jnp.allclose(out_small, ref_forward(x_small), atol=1e-4, rtol=1e-4)

    # 2) Batch not a multiple of the tile: exercises masked boundary block
    #    (no wrapper-side batch padding or slicing round trips).
    x_big = jax.random.normal(kx2, (300, state_dim), jnp.float32)
    out_big = jax.block_until_ready(
        actor_critic_forward(x_big, w1, b1, w2, b2, batch_tile=128))
    assert out_big.shape == (300, hidden)
    assert jnp.allclose(out_big, ref_forward(x_big), atol=1e-4, rtol=1e-4)

    # 3) Fused trunk + actor/critic heads; hidden never written back to HBM.
    logits_f, vals_f = actor_critic_heads(
        x_big, w1, b1, w2, b2, wa, ba, wc, bc)
    jax.block_until_ready((logits_f, vals_f))
    h_ref = ref_forward(x_big)
    logits_ref = h_ref @ wa.T + ba
    vals_ref = (h_ref @ wc.T + bc)[:, 0]
    assert logits_f.shape == (300, action_dim)
    assert vals_f.shape == (300,)
    assert jnp.allclose(logits_f, logits_ref, atol=1e-4, rtol=1e-4)
    assert jnp.allclose(vals_f, vals_ref, atol=1e-4, rtol=1e-4)

    print("KERNEL_OK")
</pallas_src>

<mosaic_0001>
module attributes {stable_mosaic.version = 11 : i64} {
  func.func @_mlp_kernel(%arg0: i32, %arg1: memref<32x4xf32, #tpu.memory_space<vmem>>, %arg2: memref<4x32xf32, #tpu.memory_space<vmem>>, %arg3: memref<1x32xf32, #tpu.memory_space<vmem>>, %arg4: memref<32x32xf32, #tpu.memory_space<vmem>>, %arg5: memref<1x32xf32, #tpu.memory_space<vmem>>, %arg6: memref<32x32xf32, #tpu.memory_space<vmem>>) attributes {dimension_semantics = [#tpu.dimension_semantics<parallel>], iteration_bounds = array<i64: 2>, scalar_prefetch = 0 : i64, scratch_operands = 0 : i64, tpu.core_type = #tpu.core_type<tc>, window_params = [{transform_indices = @transform_0, window_bounds = array<i64: 32, 4>}, {pipeline_mode = #tpu.pipeline_mode<synchronous>, transform_indices = @transform_1, window_bounds = array<i64: 4, 32>}, {pipeline_mode = #tpu.pipeline_mode<synchronous>, transform_indices = @transform_2, window_bounds = array<i64: 1, 32>}, {pipeline_mode = #tpu.pipeline_mode<synchronous>, transform_indices = @transform_3, window_bounds = array<i64: 32, 32>}, {pipeline_mode = #tpu.pipeline_mode<synchronous>, transform_indices = @transform_4, window_bounds = array<i64: 1, 32>}, {transform_indices = @transform_5, window_bounds = array<i64: 32, 32>}]} {
    %c0 = arith.constant 0 : index
    %c0_0 = arith.constant 0 : index
    %0 = vector.load %arg1[%c0, %c0_0] : memref<32x4xf32, #tpu.memory_space<vmem>>, vector<32x4xf32>
    %c0_1 = arith.constant 0 : index
    %c0_2 = arith.constant 0 : index
    %1 = vector.load %arg2[%c0_1, %c0_2] : memref<4x32xf32, #tpu.memory_space<vmem>>, vector<4x32xf32>
    %cst = arith.constant dense<0.000000e+00> : vector<32x32xf32>
    %2 = tpu.matmul %0, %1, %cst {dimension_numbers = #tpu.dot_dimension_numbers<[1], [0], [0], [1], [0, 0, 1, 1], [], []>} : vector<32x4xf32>, vector<4x32xf32>, vector<32x32xf32> -> vector<32x32xf32>
    %c0_3 = arith.constant 0 : index
    %c0_4 = arith.constant 0 : index
    %3 = vector.load %arg3[%c0_3, %c0_4] : memref<1x32xf32, #tpu.memory_space<vmem>>, vector<1x32xf32>
    %4 = vector.broadcast %3 : vector<1x32xf32> to vector<32x32xf32>
    %5 = arith.addf %2, %4 : vector<32x32xf32>
    %cst_5 = arith.constant 0.000000e+00 : f32
    %6 = vector.broadcast %cst_5 : f32 to vector<32x32xf32>
    %7 = arith.maximumf %5, %6 : vector<32x32xf32>
    %c0_6 = arith.constant 0 : index
    %c0_7 = arith.constant 0 : index
    %8 = vector.load %arg4[%c0_6, %c0_7] : memref<32x32xf32, #tpu.memory_space<vmem>>, vector<32x32xf32>
    %cst_8 = arith.constant dense<0.000000e+00> : vector<32x32xf32>
    %9 = tpu.matmul %7, %8, %cst_8 {dimension_numbers = #tpu.dot_dimension_numbers<[1], [0], [0], [1], [0, 0, 1, 1], [], []>} : vector<32x32xf32>, vector<32x32xf32>, vector<32x32xf32> -> vector<32x32xf32>
    %c0_9 = arith.constant 0 : index
    %c0_10 = arith.constant 0 : index
    %10 = vector.load %arg5[%c0_9, %c0_10] : memref<1x32xf32, #tpu.memory_space<vmem>>, vector<1x32xf32>
    %11 = vector.broadcast %10 : vector<1x32xf32> to vector<32x32xf32>
    %12 = arith.addf %9, %11 : vector<32x32xf32>
    %cst_11 = arith.constant 0.000000e+00 : f32
    %13 = vector.broadcast %cst_11 : f32 to vector<32x32xf32>
    %14 = arith.maximumf %12, %13 : vector<32x32xf32>
    %c0_12 = arith.constant 0 : index
    %c0_13 = arith.constant 0 : index
    %15 = vector.load %arg6[%c0_12, %c0_13] : memref<32x32xf32, #tpu.memory_space<vmem>>, vector<32x32xf32>
    tpu.vector_store %arg6[%c0_12, %c0_13], %14 {strides = array<i32>} : memref<32x32xf32, #tpu.memory_space<vmem>>, vector<32x32xf32>,
    return
  }
  func.func @transform_0(%arg0: i32) -> (i32, i32) {
    %c0_i32 = arith.constant 0 : i32
    %c0_i32_0 = arith.constant 0 : i32
    return %arg0, %c0_i32 : i32, i32
  }
  func.func @transform_1(%arg0: i32) -> (i32, i32) {
    %c0_i32 = arith.constant 0 : i32
    %c0_i32_0 = arith.constant 0 : i32
    %c0_i32_1 = arith.constant 0 : i32
    return %c0_i32, %c0_i32_0 : i32, i32
  }
  func.func @transform_2(%arg0: i32) -> (i32, i32) {
    %c0_i32 = arith.constant 0 : i32
    %c0_i32_0 = arith.constant 0 : i32
    %c0_i32_1 = arith.constant 0 : i32
    return %c0_i32, %c0_i32_0 : i32, i32
  }
  func.func @transform_3(%arg0: i32) -> (i32, i32) {
    %c0_i32 = arith.constant 0 : i32
    %c0_i32_0 = arith.constant 0 : i32
    %c0_i32_1 = arith.constant 0 : i32
    return %c0_i32, %c0_i32_0 : i32, i32
  }
  func.func @transform_4(%arg0: i32) -> (i32, i32) {
    %c0_i32 = arith.constant 0 : i32
    %c0_i32_0 = arith.constant 0 : i32
    %c0_i32_1 = arith.constant 0 : i32
    return %c0_i32, %c0_i32_0 : i32, i32
  }
  func.func @transform_5(%arg0: i32) -> (i32, i32) {
    %c0_i32 = arith.constant 0 : i32
    %c0_i32_0 = arith.constant 0 : i32
    return %arg0, %c0_i32 : i32, i32
  }
}

</mosaic_0001>

<llo_original>
// kernel: tpu_custom_call.1
$region0: #{tpu_custom_call.1}
  #allocation0 [shape = 'u32[]', space=smem, size = 0x4, offset = 0x4, fixed_abs, tag = 'smem constant byte address 0x4 - core index']
  #allocation1 [shape = 'u32[72,128]{1,0:T(1,128)}', space=vmem, size = 0x9000, scoped, tag = 'internal scratch']
  %s0 = inlined_call_operand.vmem [shape: f32[64,4], index: 0, kind: input, shape index: {}]
  %s1 = inlined_call_operand.vmem [shape: f32[4,32], index: 1, kind: input, shape index: {}]
  %s2 = inlined_call_operand.vmem [shape: f32[1,32], index: 2, kind: input, shape index: {}]
  %s3 = inlined_call_operand.vmem [shape: f32[32,32], index: 3, kind: input, shape index: {}]
  %s4 = inlined_call_operand.vmem [shape: f32[1,32], index: 4, kind: input, shape index: {}]
  %s5 = inlined_call_operand.vmem [shape: f32[64,32], index: 5, kind: output, shape index: {}]
  %s6 = sld [smem:[#allocation0]]
  $region53: #{tpu_custom_call.1} parent=0
    _
  %s8 = ssub.s32 1, %s6
  %s9 = scalar_select 0, %s8, %s6
  loop: start=0, step=1, limit=4
  $region2: #{tpu_custom_call.1} parent=0 // loop_pre_header
    _
  $region3: #{tpu_custom_call.1} parent=0 // loop_header
    %s11 = sphi 0, %s15
    %p12 = scmp.ge.s32.totalorder %s11, 4
    %s21 = sphi 0, %s23
    %s24 = sphi 0, %s21
    %s25 = sphi 0, %s24
    %s41 = sphi 0, %s25
    %s45 = sphi 0, %s45
    %s47 = sphi 0, %s45
    %s48 = sphi 0, %s47
    %s62 = sphi 0, %s48
    %s66 = sphi 0, %s66
    %s68 = sphi 0, %s66
    %s69 = sphi 0, %s68
    %s83 = sphi 0, %s69
    %s87 = sphi 0, %s87
    %s89 = sphi 0, %s87
    %s90 = sphi 0, %s89
    %s104 = sphi 0, %s90
    %s108 = sphi 0, %s108
    %s110 = sphi 0, %s108
    %s111 = sphi 0, %s110
    %s125 = sphi 0, %s111
    %s131 = sphi 0, %s133
    %s134 = sphi 0, %s131
    %s135 = sphi 0, %s134
    %s151 = sphi 0, %s135
  $region4: #{tpu_custom_call.1} parent=0 // loop_header_branch
    %14 = sbr.rel (%p12) target = $region8
  $region5: #{tpu_custom_call.1} parent=0 // loop_body
    %s16 = ssub.s32 %s11, 1
    %s17 = ssub.s32 %s11, 2
    %s18 = sadd.s32 %s11, 1
    %s19 = ssub.s32 %s11, %s18
    %p20 = scmp.eq.s32.totalorder %s19, 0
    %s22 = sadd.s32 %s21, 1
    %s23 = scalar_select %p20, %s21, %s22
    %p26 = pneg %p20
    %p27 = scmp.eq.s32.totalorder %s11, 1
    %p28 = por %p26, %p27
    %p29 = scmp.ne.s32.totalorder %s21, %s24
    %p30 = scmp.eq.s32.totalorder %s11, 0
    %p31 = por %p29, %p30
    %p32 = scmp.ne.s32.totalorder %s21, %s24
    %p33 = scmp.eq.s32.totalorder %s16, 1
    %p34 = por %p32, %p33
    %p35 = scmp.ne.s32.totalorder %s24, %s25
    %p36 = scmp.eq.s32.totalorder %s16, 0
    %p37 = por %p35, %p36
    %p38 = scmp.ne.s32.totalorder %s24, %s25
    %p39 = scmp.eq.s32.totalorder %s17, 1
    %p40 = por %p38, %p39
    %p42 = scmp.ne.s32.totalorder %s25, %s41
    %p43 = scmp.eq.s32.totalorder %s17, 0
    %p44 = por %p42, %p43
    %s46 = sadd.s32 %s45, 1
    %p49 = scmp.eq.s32.totalorder %s11, 1
    %p50 = scmp.ne.s32.totalorder %s45, %s47
    %p51 = scmp.eq.s32.totalorder %s11, 0
    %p52 = por %p50, %p51
    %p53 = scmp.ne.s32.totalorder %s45, %s47
    %p54 = scmp.eq.s32.totalorder %s16, 1
    %p55 = por %p53, %p54
    %p56 = scmp.ne.s32.totalorder %s47, %s48
    %p57 = scmp.eq.s32.totalorder %s16, 0
    %p58 = por %p56, %p57
    %p59 = scmp.ne.s32.totalorder %s47, %s48
    %p60 = scmp.eq.s32.totalorder %s17, 1
    %p61 = por %p59, %p60
    %p63 = scmp.ne.s32.totalorder %s48, %s62
    %p64 = scmp.eq.s32.totalorder %s17, 0
    %p65 = por %p63, %p64
    %s67 = sadd.s32 %s66, 1
    %p70 = scmp.eq.s32.totalorder %s11, 1
    %p71 = scmp.ne.s32.totalorder %s66, %s68
    %p72 = scmp.eq.s32.totalorder %s11, 0
    %p73 = por %p71, %p72
    %p74 = scmp.ne.s32.totalorder %s66, %s68
    %p75 = scmp.eq.s32.totalorder %s16, 1
    %p76 = por %p74, %p75
    %p77 = scmp.ne.s32.totalorder %s68, %s69
    %p78 = scmp.eq.s32.totalorder %s16, 0
    %p79 = por %p77, %p78
    %p80 = scmp.ne.s32.totalorder %s68, %s69
    %p81 = scmp.eq.s32.totalorder %s17, 1
    %p82 = por %p80, %p81
    %p84 = scmp.ne.s32.totalorder %s69, %s83
    %p85 = scmp.eq.s32.totalorder %s17, 0
    %p86 = por %p84, %p85
    %s88 = sadd.s32 %s87, 1
    %p91 = scmp.eq.s32.totalorder %s11, 1
    %p92 = scmp.ne.s32.totalorder %s87, %s89
    %p93 = scmp.eq.s32.totalorder %s11, 0
    %p94 = por %p92, %p93
    %p95 = scmp.ne.s32.totalorder %s87, %s89
    %p96 = scmp.eq.s32.totalorder %s16, 1
    %p97 = por %p95, %p96
    %p98 = scmp.ne.s32.totalorder %s89, %s90
    %p99 = scmp.eq.s32.totalorder %s16, 0
    %p100 = por %p98, %p99
    %p101 = scmp.ne.s32.totalorder %s89, %s90
    %p102 = scmp.eq.s32.totalorder %s17, 1
    %p103 = por %p101, %p102
    %p105 = scmp.ne.s32.totalorder %s90, %s104
    %p106 = scmp.eq.s32.totalorder %s17, 0
    %p107 = por %p105, %p106
    %s109 = sadd.s32 %s108, 1
    %p112 = scmp.eq.s32.totalorder %s11, 1
    %p113 = scmp.ne.s32.totalorder %s108, %s110
    %p114 = scmp.eq.s32.totalorder %s11, 0
    %p115 = por %p113, %p114
    %p116 = scmp.ne.s32.totalorder %s108, %s110
    %p117 = scmp.eq.s32.totalorder %s16, 1
    %p118 = por %p116, %p117
    %p119 = scmp.ne.s32.totalorder %s110, %s111
    %p120 = scmp.eq.s32.totalorder %s16, 0
    %p121 = por %p119, %p120
    %p122 = scmp.ne.s32.totalorder %s110, %s111
    %p123 = scmp.eq.s32.totalorder %s17, 1
    %p124 = por %p122, %p123
    %p126 = scmp.ne.s32.totalorder %s111, %s125
    %p127 = scmp.eq.s32.totalorder %s17, 0
    %p128 = por %p126, %p127
    %s129 = ssub.s32 %s11, %s18
    %p130 = scmp.eq.s32.totalorder %s129, 0
    %s132 = sadd.s32 %s131, 1
    %s133 = scalar_select %p130, %s131, %s132
    %p136 = pneg %p130
    %p137 = scmp.eq.s32.totalorder %s11, 1
    %p138 = por %p136, %p137
    %p139 = scmp.ne.s32.totalorder %s131, %s134
    %p140 = scmp.eq.s32.totalorder %s11, 0
    %p141 = por %p139, %p140
    %p142 = scmp.ne.s32.totalorder %s131, %s134
    %p143 = scmp.eq.s32.totalorder %s16, 1
    %p144 = por %p142, %p143
    %p145 = scmp.ne.s32.totalorder %s134, %s135
    %p146 = scmp.eq.s32.totalorder %s16, 0
    %p147 = por %p145, %p146
    %p148 = scmp.ne.s32.totalorder %s134, %s135
    %p149 = scmp.eq.s32.totalorder %s17, 1
    %p150 = por %p148, %p149
    %p152 = scmp.ne.s32.totalorder %s135, %s151
    %p153 = scmp.eq.s32.totalorder %s17, 0
    %p154 = por %p152, %p153
    %p155 = scmp.le.s32.totalorder 1, %s11
    %p156 = scmp.lt.s32.totalorder %s11, 3
    %p157 = pnand %p155, %p156
    %p158 = pneg %p157
    // Predicated region
    $region9: #{tpu_custom_call.1} parent=5 // pred_check
      _
    $region10: #{tpu_custom_call.1} parent=5 // pred_check_branch
      %160 = sbr.rel (%p157) target = $region12
    $region11: #{tpu_custom_call.1} parent=5 // pred_region
      %s161 = ssub.s32 %s11, 1
      // Predicated region
      $region13: #{tpu_custom_call.1} parent=11 // pred_check
        %p162 = pneg %p58
      $region14: #{tpu_custom_call.1} parent=11 // pred_check_branch
        %164 = sbr.rel (%p162) target = $region16
      $region15: #{tpu_custom_call.1} parent=11 // pred_region
        _
      $region16: #{tpu_custom_call.1} parent=11 // pred_fallthru
        _
      // Predicated region
      $region17: #{tpu_custom_call.1} parent=11 // pred_check
        %p165 = pneg %p79
      $region18: #{tpu_custom_call.1} parent=11 // pred_check_branch
        %167 = sbr.rel (%p165) target = $region20
      $region19: #{tpu_custom_call.1} parent=11 // pred_region
        _
      $region20: #{tpu_custom_call.1} parent=11 // pred_fallthru
        _
      // Predicated region
      $region21: #{tpu_custom_call.1} parent=11 // pred_check
        %p168 = pneg %p100
      $region22: #{tpu_custom_call.1} parent=11 // pred_check_branch
        %170 = sbr.rel (%p168) target = $region24
      $region23: #{tpu_custom_call.1} parent=11 // pred_region
        _
      $region24: #{tpu_custom_call.1} parent=11 // pred_fallthru
        _
      // Predicated region
      $region25: #{tpu_custom_call.1} parent=11 // pred_check
        %p171 = pneg %p121
      $region26: #{tpu_custom_call.1} parent=11 // pred_check_branch
        %173 = sbr.rel (%p171) target = $region28
      $region27: #{tpu_custom_call.1} parent=11 // pred_region
        _
      $region28: #{tpu_custom_call.1} parent=11 // pred_fallthru
        _
    $region12: #{tpu_custom_call.1} parent=5 // pred_fallthru
      _
    %p174 = scmp.lt.s32.totalorder %s11, 2
    // Predicated region
    $region29: #{tpu_custom_call.1} parent=5 // pred_check
      %p175 = pneg %p174
    $region30: #{tpu_custom_call.1} parent=5 // pred_check_branch
      %177 = sbr.rel (%p175) target = $region32
    $region31: #{tpu_custom_call.1} parent=5 // pred_region
      // Predicated region
      $region33: #{tpu_custom_call.1} parent=31 // pred_check
        %p178 = pneg %p31
      $region34: #{tpu_custom_call.1} parent=31 // pred_check_branch
        %180 = sbr.rel (%p178) target = $region36
      $region35: #{tpu_custom_call.1} parent=31 // pred_region
        %s181 = smul.u32 4, %s11
        %p182 = scmp.lt.s32.totalorder %s181, 7
        %s183 = scalar_select %p182, %s181, 7
        %s184 = smul.addr %s183, 8
        %s185 = scalar_lea.vmem %s0, %s184
        %s186 = smul.u32 4, %s11
      $region36: #{tpu_custom_call.1} parent=31 // pred_fallthru
        _
    $region32: #{tpu_custom_call.1} parent=5 // pred_fallthru
      _
    %p187 = scmp.le.s32.totalorder 1, %s11
    %p188 = scmp.lt.s32.totalorder %s11, 3
    %p189 = pnand %p187, %p188
    %p190 = pneg %p189
    // Predicated region
    $region37: #{tpu_custom_call.1} parent=5 // pred_check
      _
    $region38: #{tpu_custom_call.1} parent=5 // pred_check_branch
      %192 = sbr.rel (%p189) target = $region40
    $region39: #{tpu_custom_call.1} parent=5 // pred_region
      %s193 = ssub.s32 %s11, 1
      %s194 = smul.u32 4, %s16
      %p195 = scmp.lt.s32.totalorder %s194, 7
      %s196 = scalar_select %p195, %s194, 7
      %s197 = smul.addr %s196, 8
      %s198 = scalar_lea.vmem %s0, %s197
      %p199 = pneg %p37
      %p200 = pneg %p34
      %p201 = pneg %p58
      %p202 = pneg %p55
      %p203 = pneg %p79
      %p204 = pneg %p76
      %p205 = pneg %p100
      %p206 = pneg %p97
      %p207 = pneg %p121
      %p208 = pneg %p118
      %p209 = pneg %p147
      %p210 = pneg %p144
      %s211 = smul.u32 4, %s16
      %p212 = scmp.lt.s32.totalorder %s211, 7
      %s213 = scalar_select %p212, %s211, 7
      %s214 = smul.addr %s213, 8
      %s215 = scalar_lea.vmem %s5, %s214
      %s216 = smul.u32 4, %s16
      %p217 = scmp.lt.s32.totalorder %s216, 7
      %s218 = scalar_select %p217, %s216, 7
      %s219 = smul.addr %s218, 8
      %s220 = scalar_lea.vmem %s0, %s219
      %s221 = smul.u32 4, %s16
      %s222 = smul.u32 4, %s16
      %p223 = scmp.lt.s32.totalorder %s222, 7
      %s224 = scalar_select %p223, %s222, 7
      %s225 = smul.addr %s224, 8
      %s226 = scalar_lea.vmem %s5, %s225
      %s227 = smul.u32 4, %s16
      %v228 = vld [vmem:[%s220] sm:$0xff]
      %v229 = vld [vmem:[%s220 + $0x8] sm:$0xff]
      %v230 = vld [vmem:[%s220 + $0x10] sm:$0xff]
      %v231 = vld [vmem:[%s220 + $0x18] sm:$0xff]
      %v232 = vld [vmem:[%s1] sm:$0xf]
      %v233 = vld [vmem:[%s2] sm:$0x1]
      %v235 = vperm.slane %v233, 0
      %vm237 = vcmask 31744
      %v239 = vsel %vm237, %v228, 0
      %v242 = vsel %vm237, %v229, 0
      %v245 = vsel %vm237, %v230, 0
      %v248 = vsel %vm237, %v231, 0
      %vm250 = vcmask 1043456
      %v252 = vsel %vm250, %v232, 0
      %254 = vmatpush.msra.mxu0 0.0
      %255 = vmatpush.msra.mxu0 0.0
      %256 = vmatpush.msra.mxu0 0.0
      %257 = vmatpush.msra.mxu0 0.0
      %258 = vmatpush.msra.mxu0 0.0
      %259 = vmatpush.msra.mxu0 0.0
      %260 = vmatpush.msra.mxu0 0.0
      %261 = vmatpush.msra.mxu0 0.0
      %262 = vmatpush.msra.mxu0 0.0
      %263 = vmatpush.msra.mxu0 0.0
      %264 = vmatpush.msra.mxu0 0.0
      %265 = vmatpush.msra.mxu0 0.0
      %266 = vmatpush.msra.mxu0 0.0
      %267 = vmatpush.msra.mxu0 0.0
      %268 = vmatpush.msra.mxu0 0.0
      %269 = vmatpush.msra.mxu0 %v252
      %270 = vmatmul.f32.gmra.mxu0 %v239
      %v271 = vpop.f32.mrf.mxu0
      %v272 = vadd.f32 %v235, %v271
      %273 = vmatmul.f32.gmra.mxu0 %v242
      %v274 = vpop.f32.mrf.mxu0
      %v275 = vadd.f32 %v235, %v274
      %276 = vmatmul.f32.gmra.mxu0 %v245
      %v277 = vpop.f32.mrf.mxu0
      %v278 = vadd.f32 %v235, %v277
      %279 = vmatmul.f32.gmra.mxu0 %v248
      %v280 = vpop.f32.mrf.mxu0
      %v281 = vadd.f32 %v235, %v280
      %282 = vdwg.mxu0
      %v283 = vmax.f32 %v272, 0.0
      %v284 = vmax.f32 %v275, 0.0
      %v285 = vmax.f32 %v278, 0.0
      %v286 = vmax.f32 %v281, 0.0
      %v287 = vld [vmem:[%s3] sm:$0xff]
      %v288 = vld [vmem:[%s3 + $0x8] sm:$0xff]
      %v289 = vld [vmem:[%s3 + $0x10] sm:$0xff]
      %v290 = vld [vmem:[%s3 + $0x18] sm:$0xff]
      %v291 = vld [vmem:[%s4] sm:$0x1]
      %v293 = vperm.slane %v291, 0
      %vm295 = vcmask 261120
      %v297 = vsel %vm295, %v283, 0
      %v300 = vsel %vm295, %v284, 0
      %v303 = vsel %vm295, %v285, 0
      %v306 = vsel %vm295, %v286, 0
      %308 = vmatpush.msra.mxu0 0.0
      %309 = vmatpush.msra.mxu0 0.0
      %310 = vmatpush.msra.mxu0 0.0
      %311 = vmatpush.msra.mxu0 0.0
      %312 = vmatpush.msra.mxu0 0.0
      %313 = vmatpush.msra.mxu0 0.0
      %314 = vmatpush.msra.mxu0 0.0
      %315 = vmatpush.msra.mxu0 0.0
      %316 = vmatpush.msra.mxu0 0.0
      %317 = vmatpush.msra.mxu0 0.0
      %318 = vmatpush.msra.mxu0 0.0
      %319 = vmatpush.msra.mxu0 0.0
      %320 = vmatpush.msra.mxu0 %v290
      %321 = vmatpush.msra.mxu0 %v289
      %322 = vmatpush.msra.mxu0 %v288
      %323 = vmatpush.msra.mxu0 %v287
      %324 = vmatmul.f32.gmra.mxu0 %v297
      %v325 = vpop.f32.mrf.mxu0
      %v326 = vadd.f32 %v293, %v325
      %327 = vmatmul.f32.gmra.mxu0 %v300
      %v328 = vpop.f32.mrf.mxu0
      %v329 = vadd.f32 %v293, %v328
      %330 = vmatmul.f32.gmra.mxu0 %v303
      %v331 = vpop.f32.mrf.mxu0
      %v332 = vadd.f32 %v293, %v331
      %333 = vmatmul.f32.gmra.mxu0 %v306
      %v334 = vpop.f32.mrf.mxu0
      %v335 = vadd.f32 %v293, %v334
      %336 = vdwg.mxu0
      %v337 = vmax.f32 %v326, 0.0
      %v338 = vmax.f32 %v329, 0.0
      %v339 = vmax.f32 %v332, 0.0
      %v340 = vmax.f32 %v335, 0.0
      %341 = vst.msk [vmem:[%s226] sm:$0xff] %vm295, %v337
      %342 = vst.msk [vmem:[%s226 + $0x8] sm:$0xff] %vm295, %v338
      %343 = vst.msk [vmem:[%s226 + $0x10] sm:$0xff] %vm295, %v339
      %344 = vst.msk [vmem:[%s226 + $0x18] sm:$0xff] %vm295, %v340
      %s345 = smul.u32 4, %s16
      %p346 = scmp.lt.s32.totalorder %s345, 7
      %s347 = scalar_select %p346, %s345, 7
      %s348 = smul.addr %s347, 8
      %s349 = scalar_lea.vmem %s5, %s348
      // Predicated region
      $region41: #{tpu_custom_call.1} parent=39 // pred_check
        %p350 = pneg %p144
      $region42: #{tpu_custom_call.1} parent=39 // pred_check_branch
        %352 = sbr.rel (%p350) target = $region44
      $region43: #{tpu_custom_call.1} parent=39 // pred_region
        %s353 = smul.u32 4, %s16
      $region44: #{tpu_custom_call.1} parent=39 // pred_fallthru
        _
    $region40: #{tpu_custom_call.1} parent=5 // pred_fallthru
      _
    %p354 = scmp.le.s32.totalorder 2, %s11
    // Predicated region
    $region45: #{tpu_custom_call.1} parent=5 // pred_check
      %p355 = pneg %p354
    $region46: #{tpu_custom_call.1} parent=5 // pred_check_branch
      %357 = sbr.rel (%p355) target = $region48
    $region47: #{tpu_custom_call.1} parent=5 // pred_region
      %s358 = ssub.s32 %s11, 2
      // Predicated region
      $region49: #{tpu_custom_call.1} parent=47 // pred_check
        %p359 = pneg %p150
      $region50: #{tpu_custom_call.1} parent=47 // pred_check_branch
        %361 = sbr.rel (%p359) target = $region52
      $region51: #{tpu_custom_call.1} parent=47 // pred_region
        %s362 = smul.u32 4, %s17
        %p363 = scmp.lt.s32.totalorder %s362, 7
        %s364 = scalar_select %p363, %s362, 7
        %s365 = smul.addr %s364, 8
        %s366 = scalar_lea.vmem %s5, %s365
      $region52: #{tpu_custom_call.1} parent=47 // pred_fallthru
        _
    $region48: #{tpu_custom_call.1} parent=5 // pred_fallthru
      _
  $region6: #{tpu_custom_call.1} parent=0 // loop_footer
    %s15 = sadd.s32 1, %s11
  $region7: #{tpu_custom_call.1} parent=0 // loop_footer_branch
    %10 = sbr.rel target = $region3
  $region8: #{tpu_custom_call.1} parent=0 // loop_exit
    _

</llo_original>
